<compile_context>
chip_gen: v6e
topology: v6e:2x2x1
jax: 0.10.0
libtpu: 0.0.40
codegen_flags: <defaults>
</compile_context>

<pallas_src>
import functools

import jax
import jax.numpy as jnp
from jax import lax
from jax.experimental import pallas as pl
from jax.experimental.pallas import tpu as pltpu

BN_EPS = 1e-5


def _round_up(a, b):
    return (a + b - 1) // b * b


# ---------------------------------------------------------------------------
# Pass 1: tiled GEMM (conv via im2col) + per-tile BN channel statistics.
# ---------------------------------------------------------------------------
def _gemm_stats_kernel(p_ref, w_ref, y_ref, stats_ref, acc_ref):
    ki = pl.program_id(1)

    @pl.when(ki == 0)
    def _():
        acc_ref[...] = jnp.zeros_like(acc_ref)

    acc_ref[...] += jnp.dot(p_ref[...], w_ref[...],
                            preferred_element_type=jnp.float32)

    @pl.when(ki == pl.num_programs(1) - 1)
    def _():
        y = acc_ref[...]
        y_ref[...] = y
        s1 = jnp.sum(y, axis=0, keepdims=True)        # (1, C) per-channel sum
        s2 = jnp.sum(y * y, axis=0, keepdims=True)    # (1, C) per-channel sum of squares
        stats_ref[...] = jnp.concatenate([s1, s2], axis=0)[None]  # (1, 2, C)


# ---------------------------------------------------------------------------
# Pass 2: fused per-channel scale/shift (the BN normalize), one FMA/element.
# ---------------------------------------------------------------------------
def _scale_shift_kernel(y_ref, scale_ref, shift_ref, o_ref):
    o_ref[...] = (y_ref[...] * scale_ref[...] + shift_ref[...]).astype(o_ref.dtype)


def _im2col(x, kh, kw, stride, padding):
    """x: (N, C, H, W) -> patches (N*Ho*Wo, C*kh*kw), PyTorch weight flattening order."""
    n, c, h, w = x.shape
    xp = jnp.pad(x, ((0, 0), (0, 0), (padding, padding), (padding, padding)))
    ho = (h + 2 * padding - kh) // stride + 1
    wo = (w + 2 * padding - kw) // stride + 1
    cols = []
    for i in range(kh):
        for j in range(kw):
            sl = xp[:, :, i:i + (ho - 1) * stride + 1:stride,
                        j:j + (wo - 1) * stride + 1:stride]      # (N, C, Ho, Wo)
            cols.append(sl)
    patches = jnp.stack(cols, axis=0)                    # (kh*kw, N, C, Ho, Wo)
    patches = jnp.transpose(patches, (1, 3, 4, 2, 0))    # (N, Ho, Wo, C, kh*kw)
    patches = patches.reshape(n * ho * wo, c * kh * kw)
    return patches, ho, wo


@functools.partial(jax.jit, static_argnames=("kernel_size", "stride", "padding",
                                             "tm", "compute_dtype"))
def conv_bn_forward(x, weight, gamma, beta, *, kernel_size, stride, padding,
                    tm=512, compute_dtype=jnp.float32):
    """x: (N, Cin, H, W); weight: (Cout, Cin, kh, kw); gamma/beta: (Cout,).
    Returns NCHW == nn.BatchNorm2d(nn.Conv2d(..., bias=False)(x)) in training mode."""
    n, cin, h, w = x.shape
    cout = weight.shape[0]
    kh = kw = kernel_size
    out_dtype = x.dtype

    # --- im2col (plain-JAX glue) -------------------------------------------
    patches, ho, wo = _im2col(x.astype(compute_dtype), kh, kw, stride, padding)
    m_real, k_real = patches.shape

    # --- pad to lane/tile-friendly sizes ------------------------------------
    c_pad = _round_up(cout, 128)
    k128 = _round_up(k_real, 128)
    tk = min(k128, 512)
    k_pad = _round_up(k128, tk)
    tm = min(tm, _round_up(m_real, 8))          # multiple of 8 sublanes
    m_pad = _round_up(m_real, tm)

    patches = jnp.pad(patches, ((0, m_pad - m_real), (0, k_pad - k_real)))
    w_mat = weight.reshape(cout, k_real).T.astype(compute_dtype)        # (K, Cout)
    w_mat = jnp.pad(w_mat, ((0, k_pad - k_real), (0, c_pad - cout)))

    nm, nk = m_pad // tm, k_pad // tk

    # --- pass 1: pipelined GEMM + per-tile channel sums ---------------------
    y_full, stats = pl.pallas_call(
        _gemm_stats_kernel,
        out_shape=(jax.ShapeDtypeStruct((m_pad, c_pad), jnp.float32),
                   jax.ShapeDtypeStruct((nm, 2, c_pad), jnp.float32)),
        grid=(nm, nk),
        in_specs=[
            pl.BlockSpec((tm, tk), lambda mi, ki: (mi, ki)),
            pl.BlockSpec((tk, c_pad), lambda mi, ki: (ki, 0)),
        ],
        out_specs=[
            pl.BlockSpec((tm, c_pad), lambda mi, ki: (mi, 0)),
            pl.BlockSpec((1, 2, c_pad), lambda mi, ki: (mi, 0, 0)),
        ],
        scratch_shapes=[pltpu.VMEM((tm, c_pad), jnp.float32)],
        compiler_params=pltpu.CompilerParams(
            dimension_semantics=("parallel", "arbitrary"),
            vmem_limit_bytes=32 * 1024 * 1024),
        cost_estimate=pl.CostEstimate(
            flops=2 * m_pad * k_pad * c_pad,
            transcendentals=0,
            bytes_accessed=(patches.size * patches.dtype.itemsize
                            + w_mat.size * w_mat.dtype.itemsize
                            + 4 * m_pad * c_pad)),
    )(patches, w_mat)

    # --- fold BN into per-channel scale/shift (tiny (Cout,) math, plain JAX) --
    sums = jnp.sum(stats, axis=0)                        # (2, c_pad)
    mean = sums[0] / m_real
    var = jnp.maximum(sums[1] / m_real - mean * mean, 0.0)   # biased variance
    inv = lax.rsqrt(var + BN_EPS)
    gamma_p = jnp.pad(gamma.astype(jnp.float32), (0, c_pad - cout))
    beta_p = jnp.pad(beta.astype(jnp.float32), (0, c_pad - cout))
    scale = (gamma_p * inv).reshape(1, c_pad)
    shift = (beta_p - mean * gamma_p * inv).reshape(1, c_pad)

    # --- pass 2: normalize, tiled over M, megacore-parallel -----------------
    out_flat = pl.pallas_call(
        _scale_shift_kernel,
        out_shape=jax.ShapeDtypeStruct((m_pad, c_pad), out_dtype),
        grid=(nm,),
        in_specs=[
            pl.BlockSpec((tm, c_pad), lambda mi: (mi, 0)),
            pl.BlockSpec((1, c_pad), lambda mi: (0, 0)),
            pl.BlockSpec((1, c_pad), lambda mi: (0, 0)),
        ],
        out_specs=pl.BlockSpec((tm, c_pad), lambda mi: (mi, 0)),
        compiler_params=pltpu.CompilerParams(
            dimension_semantics=("parallel",),
            vmem_limit_bytes=32 * 1024 * 1024),
    )(y_full, scale, shift)

    # (M, Cout) -> (N, Ho, Wo, Cout) -> NCHW (module contract).
    out = out_flat[:m_real, :cout].reshape(n, ho, wo, cout).transpose(0, 3, 1, 2)
    return out


def _reference(x, weight, gamma, beta, *, stride, padding):
    y = lax.conv_general_dilated(
        x.astype(jnp.float32), weight.astype(jnp.float32),
        window_strides=(stride, stride),
        padding=[(padding, padding), (padding, padding)],
        dimension_numbers=("NCHW", "OIHW", "NCHW"))
    mean = jnp.mean(y, axis=(0, 2, 3), keepdims=True)
    var = jnp.mean((y - mean) ** 2, axis=(0, 2, 3), keepdims=True)
    return (y - mean) * lax.rsqrt(var + BN_EPS) * gamma.reshape(1, -1, 1, 1) \
        + beta.reshape(1, -1, 1, 1)


if __name__ == "__main__":
    # Small shapes: batch=2, in_channels=4, out_channels=8, spatial=16, 3x3 conv, pad=1.
    N, CIN, COUT, H, W = 2, 4, 8, 16, 16
    KS, STRIDE, PAD = 3, 1, 1

    key = jax.random.PRNGKey(0)
    kx, kw_ = jax.random.split(key)
    x = jax.random.normal(kx, (N, CIN, H, W), dtype=jnp.float32)
    weight = 0.1 * jax.random.normal(kw_, (COUT, CIN, KS, KS), dtype=jnp.float32)
    gamma = jnp.ones((COUT,), dtype=jnp.float32)   # BatchNorm2d init (training mode)
    beta = jnp.zeros((COUT,), dtype=jnp.float32)

    # f32 GEMM operands: matches the f32 PyTorch module numerics.
    # tm=128 so the toy M=512 exercises multi-tile stats accumulation.
    out = conv_bn_forward(x, weight, gamma, beta, kernel_size=KS, stride=STRIDE,
                          padding=PAD, tm=128, compute_dtype=jnp.float32)
    out = jax.block_until_ready(out)

    ref = _reference(x, weight, gamma, beta, stride=STRIDE, padding=PAD)
    assert out.shape == (N, COUT, H, W), out.shape
    assert jnp.allclose(out, ref, atol=1e-4, rtol=1e-4), float(jnp.max(jnp.abs(out - ref)))

    # bf16 GEMM operands (f32 accumulation) - the fast MXU path on v5e/v6e/v7x.
    out_bf16 = conv_bn_forward(x, weight, gamma, beta, kernel_size=KS, stride=STRIDE,
                               padding=PAD, tm=128, compute_dtype=jnp.bfloat16)
    out_bf16 = jax.block_until_ready(out_bf16)
    assert jnp.allclose(out_bf16, ref, atol=1e-1, rtol=1e-1), \
        float(jnp.max(jnp.abs(out_bf16 - ref)))

    print("KERNEL_OK")
</pallas_src>

<mosaic_0001>
module attributes {stable_mosaic.version = 11 : i64} {
  func.func @_gemm_stats_kernel(%arg0: i32, %arg1: i32, %arg2: memref<128x128xf32, #tpu.memory_space<vmem>>, %arg3: memref<128x128xf32, #tpu.memory_space<vmem>>, %arg4: memref<128x128xf32, #tpu.memory_space<vmem>>, %arg5: memref<1x2x128xf32, #tpu.memory_space<vmem>>, %arg6: memref<128x128xf32, #tpu.memory_space<vmem>>) attributes {dimension_semantics = [#tpu.dimension_semantics<parallel>, #tpu.dimension_semantics<arbitrary>], iteration_bounds = array<i64: 4, 1>, scalar_prefetch = 0 : i64, scratch_operands = 1 : i64, tpu.core_type = #tpu.core_type<tc>, window_params = [{transform_indices = @transform_0, window_bounds = array<i64: 128, 128>}, {transform_indices = @transform_1, window_bounds = array<i64: 128, 128>}, {transform_indices = @transform_2, window_bounds = array<i64: 128, 128>}, {transform_indices = @transform_3, window_bounds = array<i64: 1, 2, 128>}]} {
    %c0_i32 = arith.constant 0 : i32
    %0 = arith.cmpi eq, %arg1, %c0_i32 : i32
    %1 = arith.extui %0 : i1 to i32
    %c0_i32_0 = arith.constant 0 : i32
    %2 = arith.cmpi ne, %1, %c0_i32_0 : i32
    scf.if %2 {
      %cst_10 = arith.constant 0.000000e+00 : f32
      %12 = vector.broadcast %cst_10 : f32 to vector<128x128xf32>
      %c0_11 = arith.constant 0 : index
      %c0_12 = arith.constant 0 : index
      %13 = vector.load %arg6[%c0_11, %c0_12] : memref<128x128xf32, #tpu.memory_space<vmem>>, vector<128x128xf32>
      tpu.vector_store %arg6[%c0_11, %c0_12], %12 {strides = array<i32>} : memref<128x128xf32, #tpu.memory_space<vmem>>, vector<128x128xf32>,
    } else {
    }
    %c0 = arith.constant 0 : index
    %c0_1 = arith.constant 0 : index
    %3 = vector.load %arg6[%c0, %c0_1] : memref<128x128xf32, #tpu.memory_space<vmem>>, vector<128x128xf32>
    %c0_2 = arith.constant 0 : index
    %c0_3 = arith.constant 0 : index
    %4 = vector.load %arg2[%c0_2, %c0_3] : memref<128x128xf32, #tpu.memory_space<vmem>>, vector<128x128xf32>
    %c0_4 = arith.constant 0 : index
    %c0_5 = arith.constant 0 : index
    %5 = vector.load %arg3[%c0_4, %c0_5] : memref<128x128xf32, #tpu.memory_space<vmem>>, vector<128x128xf32>
    %cst = arith.constant dense<0.000000e+00> : vector<128x128xf32>
    %6 = tpu.matmul %4, %5, %cst {dimension_numbers = #tpu.dot_dimension_numbers<[1], [0], [0], [1], [0, 0, 1, 1], [], []>} : vector<128x128xf32>, vector<128x128xf32>, vector<128x128xf32> -> vector<128x128xf32>
    %7 = arith.addf %3, %6 : vector<128x128xf32>
    %c0_6 = arith.constant 0 : index
    %c0_7 = arith.constant 0 : index
    %8 = vector.load %arg6[%c0_6, %c0_7] : memref<128x128xf32, #tpu.memory_space<vmem>>, vector<128x128xf32>
    tpu.vector_store %arg6[%c0_6, %c0_7], %7 {strides = array<i32>} : memref<128x128xf32, #tpu.memory_space<vmem>>, vector<128x128xf32>,
    %c0_i32_8 = arith.constant 0 : i32
    %9 = arith.cmpi eq, %arg1, %c0_i32_8 : i32
    %10 = arith.extui %9 : i1 to i32
    %c0_i32_9 = arith.constant 0 : i32
    %11 = arith.cmpi ne, %10, %c0_i32_9 : i32
    scf.if %11 {
      %c0_10 = arith.constant 0 : index
      %c0_11 = arith.constant 0 : index
      %12 = vector.load %arg6[%c0_10, %c0_11] : memref<128x128xf32, #tpu.memory_space<vmem>>, vector<128x128xf32>
      %c0_12 = arith.constant 0 : index
      %c0_13 = arith.constant 0 : index
      %13 = vector.load %arg4[%c0_12, %c0_13] : memref<128x128xf32, #tpu.memory_space<vmem>>, vector<128x128xf32>
      tpu.vector_store %arg4[%c0_12, %c0_13], %12 {strides = array<i32>} : memref<128x128xf32, #tpu.memory_space<vmem>>, vector<128x128xf32>,
      %cst_14 = arith.constant dense<0.000000e+00> : vector<128xf32>
      %14 = vector.multi_reduction <add>, %12, %cst_14 [0] : vector<128x128xf32> to vector<128xf32>
      %15 = vector.shape_cast %14 : vector<128xf32> to vector<1x128xf32>
      %16 = arith.mulf %12, %12 : vector<128x128xf32>
      %cst_15 = arith.constant dense<0.000000e+00> : vector<128xf32>
      %17 = vector.multi_reduction <add>, %16, %cst_15 [0] : vector<128x128xf32> to vector<128xf32>
      %18 = vector.shape_cast %17 : vector<128xf32> to vector<1x128xf32>
      %19 = tpu.concatenate %15, %18 in 0 : vector<1x128xf32>, vector<1x128xf32> -> vector<2x128xf32>
      %20 = vector.shape_cast %19 : vector<2x128xf32> to vector<1x2x128xf32>
      %c0_16 = arith.constant 0 : index
      %c0_17 = arith.constant 0 : index
      %c0_18 = arith.constant 0 : index
      %21 = vector.load %arg5[%c0_16, %c0_17, %c0_18] : memref<1x2x128xf32, #tpu.memory_space<vmem>>, vector<1x2x128xf32>
      tpu.vector_store %arg5[%c0_16, %c0_17, %c0_18], %20 {strides = array<i32>} : memref<1x2x128xf32, #tpu.memory_space<vmem>>, vector<1x2x128xf32>,
    } else {
    }
    return
  }
  func.func @transform_0(%arg0: i32, %arg1: i32) -> (i32, i32) {
    %c0_i32 = arith.constant 0 : i32
    return %arg0, %arg1 : i32, i32
  }
  func.func @transform_1(%arg0: i32, %arg1: i32) -> (i32, i32) {
    %c0_i32 = arith.constant 0 : i32
    %c0_i32_0 = arith.constant 0 : i32
    return %arg1, %c0_i32 : i32, i32
  }
  func.func @transform_2(%arg0: i32, %arg1: i32) -> (i32, i32) {
    %c0_i32 = arith.constant 0 : i32
    %c0_i32_0 = arith.constant 0 : i32
    return %arg0, %c0_i32 : i32, i32
  }
  func.func @transform_3(%arg0: i32, %arg1: i32) -> (i32, i32, i32) {
    %c0_i32 = arith.constant 0 : i32
    %c0_i32_0 = arith.constant 0 : i32
    %c0_i32_1 = arith.constant 0 : i32
    return %arg0, %c0_i32, %c0_i32_0 : i32, i32, i32
  }
}

module attributes {stable_mosaic.version = 11 : i64} {
  func.func @_scale_shift_kernel(%arg0: i32, %arg1: memref<128x128xf32, #tpu.memory_space<vmem>>, %arg2: memref<1x128xf32, #tpu.memory_space<vmem>>, %arg3: memref<1x128xf32, #tpu.memory_space<vmem>>, %arg4: memref<128x128xf32, #tpu.memory_space<vmem>>) attributes {dimension_semantics = [#tpu.dimension_semantics<parallel>], iteration_bounds = array<i64: 4>, scalar_prefetch = 0 : i64, scratch_operands = 0 : i64, tpu.core_type = #tpu.core_type<tc>, window_params = [{transform_indices = @transform_0, window_bounds = array<i64: 128, 128>}, {pipeline_mode = #tpu.pipeline_mode<synchronous>, transform_indices = @transform_1, window_bounds = array<i64: 1, 128>}, {pipeline_mode = #tpu.pipeline_mode<synchronous>, transform_indices = @transform_2, window_bounds = array<i64: 1, 128>}, {transform_indices = @transform_3, window_bounds = array<i64: 128, 128>}]} {
    %c0 = arith.constant 0 : index
    %c0_0 = arith.constant 0 : index
    %0 = vector.load %arg1[%c0, %c0_0] : memref<128x128xf32, #tpu.memory_space<vmem>>, vector<128x128xf32>
    %c0_1 = arith.constant 0 : index
    %c0_2 = arith.constant 0 : index
    %1 = vector.load %arg2[%c0_1, %c0_2] : memref<1x128xf32, #tpu.memory_space<vmem>>, vector<1x128xf32>
    %2 = vector.broadcast %1 : vector<1x128xf32> to vector<128x128xf32>
    %3 = arith.mulf %0, %2 : vector<128x128xf32>
    %c0_3 = arith.constant 0 : index
    %c0_4 = arith.constant 0 : index
    %4 = vector.load %arg3[%c0_3, %c0_4] : memref<1x128xf32, #tpu.memory_space<vmem>>, vector<1x128xf32>
    %5 = vector.broadcast %4 : vector<1x128xf32> to vector<128x128xf32>
    %6 = arith.addf %3, %5 : vector<128x128xf32>
    %c0_5 = arith.constant 0 : index
    %c0_6 = arith.constant 0 : index
    %7 = vector.load %arg4[%c0_5, %c0_6] : memref<128x128xf32, #tpu.memory_space<vmem>>, vector<128x128xf32>
    tpu.vector_store %arg4[%c0_5, %c0_6], %6 {strides = array<i32>} : memref<128x128xf32, #tpu.memory_space<vmem>>, vector<128x128xf32>,
    return
  }
  func.func @transform_0(%arg0: i32) -> (i32, i32) {
    %c0_i32 = arith.constant 0 : i32
    %c0_i32_0 = arith.constant 0 : i32
    return %arg0, %c0_i32 : i32, i32
  }
  func.func @transform_1(%arg0: i32) -> (i32, i32) {
    %c0_i32 = arith.constant 0 : i32
    %c0_i32_0 = arith.constant 0 : i32
    %c0_i32_1 = arith.constant 0 : i32
    return %c0_i32, %c0_i32_0 : i32, i32
  }
  func.func @transform_2(%arg0: i32) -> (i32, i32) {
    %c0_i32 = arith.constant 0 : i32
    %c0_i32_0 = arith.constant 0 : i32
    %c0_i32_1 = arith.constant 0 : i32
    return %c0_i32, %c0_i32_0 : i32, i32
  }
  func.func @transform_3(%arg0: i32) -> (i32, i32) {
    %c0_i32 = arith.constant 0 : i32
    %c0_i32_0 = arith.constant 0 : i32
    return %arg0, %c0_i32 : i32, i32
  }
}

</mosaic_0001>

<llo_original>
// kernel: conv_bn_forward.3
$region0: #{conv_bn_forward.3}
  #allocation0 [shape = 'u32[]', space=smem, size = 0x4, offset = 0x4, fixed_abs, tag = 'smem constant byte address 0x4 - core index']
  #allocation1 [shape = 'u32[144,128]{1,0:T(1,128)}', space=vmem, size = 0x12000, scoped, tag = 'internal scratch']
  %s0 = inlined_call_operand.vmem [shape: f32[512,128], index: 0, kind: input, shape index: {}]
  %s1 = inlined_call_operand.vmem [shape: f32[1,128], index: 1, kind: input, shape index: {}]
  %s2 = inlined_call_operand.vmem [shape: f32[1,128], index: 2, kind: input, shape index: {}]
  %s3 = inlined_call_operand.vmem [shape: f32[512,128], index: 3, kind: output, shape index: {}]
  %s4 = sld [smem:[#allocation0]]
  $region45: #{conv_bn_forward.3} parent=0
    _
  %s6 = ssub.s32 1, %s4
  %s7 = scalar_select 0, %s6, %s4
  loop: start=0, step=1, limit=6
  $region2: #{conv_bn_forward.3} parent=0 // loop_pre_header
    _
  $region3: #{conv_bn_forward.3} parent=0 // loop_header
    %s9 = sphi 0, %s13
    %p10 = scmp.ge.s32.totalorder %s9, 6
    %s19 = sphi 0, %s21
    %s22 = sphi 0, %s19
    %s23 = sphi 0, %s22
    %s39 = sphi 0, %s23
    %s43 = sphi 0, %s43
    %s45 = sphi 0, %s43
    %s46 = sphi 0, %s45
    %s60 = sphi 0, %s46
    %s64 = sphi 0, %s64
    %s66 = sphi 0, %s64
    %s67 = sphi 0, %s66
    %s81 = sphi 0, %s67
    %s87 = sphi 0, %s89
    %s90 = sphi 0, %s87
    %s91 = sphi 0, %s90
    %s107 = sphi 0, %s91
  $region4: #{conv_bn_forward.3} parent=0 // loop_header_branch
    %12 = sbr.rel (%p10) target = $region8
  $region5: #{conv_bn_forward.3} parent=0 // loop_body
    %s14 = ssub.s32 %s9, 1
    %s15 = ssub.s32 %s9, 2
    %s16 = sadd.s32 %s9, 1
    %s17 = ssub.s32 %s9, %s16
    %p18 = scmp.eq.s32.totalorder %s17, 0
    %s20 = sadd.s32 %s19, 1
    %s21 = scalar_select %p18, %s19, %s20
    %p24 = pneg %p18
    %p25 = scmp.eq.s32.totalorder %s9, 3
    %p26 = por %p24, %p25
    %p27 = scmp.ne.s32.totalorder %s19, %s22
    %p28 = scmp.eq.s32.totalorder %s9, 0
    %p29 = por %p27, %p28
    %p30 = scmp.ne.s32.totalorder %s19, %s22
    %p31 = scmp.eq.s32.totalorder %s14, 3
    %p32 = por %p30, %p31
    %p33 = scmp.ne.s32.totalorder %s22, %s23
    %p34 = scmp.eq.s32.totalorder %s14, 0
    %p35 = por %p33, %p34
    %p36 = scmp.ne.s32.totalorder %s22, %s23
    %p37 = scmp.eq.s32.totalorder %s15, 3
    %p38 = por %p36, %p37
    %p40 = scmp.ne.s32.totalorder %s23, %s39
    %p41 = scmp.eq.s32.totalorder %s15, 0
    %p42 = por %p40, %p41
    %s44 = sadd.s32 %s43, 1
    %p47 = scmp.eq.s32.totalorder %s9, 3
    %p48 = scmp.ne.s32.totalorder %s43, %s45
    %p49 = scmp.eq.s32.totalorder %s9, 0
    %p50 = por %p48, %p49
    %p51 = scmp.ne.s32.totalorder %s43, %s45
    %p52 = scmp.eq.s32.totalorder %s14, 3
    %p53 = por %p51, %p52
    %p54 = scmp.ne.s32.totalorder %s45, %s46
    %p55 = scmp.eq.s32.totalorder %s14, 0
    %p56 = por %p54, %p55
    %p57 = scmp.ne.s32.totalorder %s45, %s46
    %p58 = scmp.eq.s32.totalorder %s15, 3
    %p59 = por %p57, %p58
    %p61 = scmp.ne.s32.totalorder %s46, %s60
    %p62 = scmp.eq.s32.totalorder %s15, 0
    %p63 = por %p61, %p62
    %s65 = sadd.s32 %s64, 1
    %p68 = scmp.eq.s32.totalorder %s9, 3
    %p69 = scmp.ne.s32.totalorder %s64, %s66
    %p70 = scmp.eq.s32.totalorder %s9, 0
    %p71 = por %p69, %p70
    %p72 = scmp.ne.s32.totalorder %s64, %s66
    %p73 = scmp.eq.s32.totalorder %s14, 3
    %p74 = por %p72, %p73
    %p75 = scmp.ne.s32.totalorder %s66, %s67
    %p76 = scmp.eq.s32.totalorder %s14, 0
    %p77 = por %p75, %p76
    %p78 = scmp.ne.s32.totalorder %s66, %s67
    %p79 = scmp.eq.s32.totalorder %s15, 3
    %p80 = por %p78, %p79
    %p82 = scmp.ne.s32.totalorder %s67, %s81
    %p83 = scmp.eq.s32.totalorder %s15, 0
    %p84 = por %p82, %p83
    %s85 = ssub.s32 %s9, %s16
    %p86 = scmp.eq.s32.totalorder %s85, 0
    %s88 = sadd.s32 %s87, 1
    %s89 = scalar_select %p86, %s87, %s88
    %p92 = pneg %p86
    %p93 = scmp.eq.s32.totalorder %s9, 3
    %p94 = por %p92, %p93
    %p95 = scmp.ne.s32.totalorder %s87, %s90
    %p96 = scmp.eq.s32.totalorder %s9, 0
    %p97 = por %p95, %p96
    %p98 = scmp.ne.s32.totalorder %s87, %s90
    %p99 = scmp.eq.s32.totalorder %s14, 3
    %p100 = por %p98, %p99
    %p101 = scmp.ne.s32.totalorder %s90, %s91
    %p102 = scmp.eq.s32.totalorder %s14, 0
    %p103 = por %p101, %p102
    %p104 = scmp.ne.s32.totalorder %s90, %s91
    %p105 = scmp.eq.s32.totalorder %s15, 3
    %p106 = por %p104, %p105
    %p108 = scmp.ne.s32.totalorder %s91, %s107
    %p109 = scmp.eq.s32.totalorder %s15, 0
    %p110 = por %p108, %p109
    %p111 = scmp.le.s32.totalorder 1, %s9
    %p112 = scmp.lt.s32.totalorder %s9, 5
    %p113 = pnand %p111, %p112
    %p114 = pneg %p113
    // Predicated region
    $region9: #{conv_bn_forward.3} parent=5 // pred_check
      _
    $region10: #{conv_bn_forward.3} parent=5 // pred_check_branch
      %116 = sbr.rel (%p113) target = $region12
    $region11: #{conv_bn_forward.3} parent=5 // pred_region
      %s117 = ssub.s32 %s9, 1
      // Predicated region
      $region13: #{conv_bn_forward.3} parent=11 // pred_check
        %p118 = pneg %p56
      $region14: #{conv_bn_forward.3} parent=11 // pred_check_branch
        %120 = sbr.rel (%p118) target = $region16
      $region15: #{conv_bn_forward.3} parent=11 // pred_region
        _
      $region16: #{conv_bn_forward.3} parent=11 // pred_fallthru
        _
      // Predicated region
      $region17: #{conv_bn_forward.3} parent=11 // pred_check
        %p121 = pneg %p77
      $region18: #{conv_bn_forward.3} parent=11 // pred_check_branch
        %123 = sbr.rel (%p121) target = $region20
      $region19: #{conv_bn_forward.3} parent=11 // pred_region
        _
      $region20: #{conv_bn_forward.3} parent=11 // pred_fallthru
        _
    $region12: #{conv_bn_forward.3} parent=5 // pred_fallthru
      _
    %p124 = scmp.lt.s32.totalorder %s9, 4
    // Predicated region
    $region21: #{conv_bn_forward.3} parent=5 // pred_check
      %p125 = pneg %p124
    $region22: #{conv_bn_forward.3} parent=5 // pred_check_branch
      %127 = sbr.rel (%p125) target = $region24
    $region23: #{conv_bn_forward.3} parent=5 // pred_region
      // Predicated region
      $region25: #{conv_bn_forward.3} parent=23 // pred_check
        %p128 = pneg %p29
      $region26: #{conv_bn_forward.3} parent=23 // pred_check_branch
        %130 = sbr.rel (%p128) target = $region28
      $region27: #{conv_bn_forward.3} parent=23 // pred_region
        %s131 = smul.u32 16, %s9
        %p132 = scmp.lt.s32.totalorder %s131, 63
        %s133 = scalar_select %p132, %s131, 63
        %s134 = smul.addr %s133, 8
        %s135 = scalar_lea.vmem %s0, %s134
        %s136 = smul.u32 16, %s9
      $region28: #{conv_bn_forward.3} parent=23 // pred_fallthru
        _
    $region24: #{conv_bn_forward.3} parent=5 // pred_fallthru
      _
    %p137 = scmp.le.s32.totalorder 1, %s9
    %p138 = scmp.lt.s32.totalorder %s9, 5
    %p139 = pnand %p137, %p138
    %p140 = pneg %p139
    // Predicated region
    $region29: #{conv_bn_forward.3} parent=5 // pred_check
      _
    $region30: #{conv_bn_forward.3} parent=5 // pred_check_branch
      %142 = sbr.rel (%p139) target = $region32
    $region31: #{conv_bn_forward.3} parent=5 // pred_region
      %s143 = ssub.s32 %s9, 1
      %s144 = smul.u32 16, %s14
      %p145 = scmp.lt.s32.totalorder %s144, 63
      %s146 = scalar_select %p145, %s144, 63
      %s147 = smul.addr %s146, 8
      %s148 = scalar_lea.vmem %s0, %s147
      %p149 = pneg %p35
      %p150 = pneg %p32
      %p151 = pneg %p56
      %p152 = pneg %p53
      %p153 = pneg %p77
      %p154 = pneg %p74
      %p155 = pneg %p103
      %p156 = pneg %p100
      %s157 = smul.u32 16, %s14
      %p158 = scmp.lt.s32.totalorder %s157, 63
      %s159 = scalar_select %p158, %s157, 63
      %s160 = smul.addr %s159, 8
      %s161 = scalar_lea.vmem %s3, %s160
      %s162 = smul.u32 16, %s14
      %p163 = scmp.lt.s32.totalorder %s162, 63
      %s164 = scalar_select %p163, %s162, 63
      %s165 = smul.addr %s164, 8
      %s166 = scalar_lea.vmem %s0, %s165
      %s167 = smul.u32 16, %s14
      %s168 = smul.u32 16, %s14
      %p169 = scmp.lt.s32.totalorder %s168, 63
      %s170 = scalar_select %p169, %s168, 63
      %s171 = smul.addr %s170, 8
      %s172 = scalar_lea.vmem %s3, %s171
      %s173 = smul.u32 16, %s14
      %v174 = vld [vmem:[%s166] sm:$0xff]
      %v175 = vld [vmem:[%s166 + $0x8] sm:$0xff]
      %v176 = vld [vmem:[%s166 + $0x10] sm:$0xff]
      %v177 = vld [vmem:[%s166 + $0x18] sm:$0xff]
      %v178 = vld [vmem:[%s166 + $0x20] sm:$0xff]
      %v179 = vld [vmem:[%s166 + $0x28] sm:$0xff]
      %v180 = vld [vmem:[%s166 + $0x30] sm:$0xff]
      %v181 = vld [vmem:[%s166 + $0x38] sm:$0xff]
      %v182 = vld [vmem:[%s166 + $0x40] sm:$0xff]
      %v183 = vld [vmem:[%s166 + $0x48] sm:$0xff]
      %v184 = vld [vmem:[%s166 + $0x50] sm:$0xff]
      %v185 = vld [vmem:[%s166 + $0x58] sm:$0xff]
      %v186 = vld [vmem:[%s166 + $0x60] sm:$0xff]
      %v187 = vld [vmem:[%s166 + $0x68] sm:$0xff]
      %v188 = vld [vmem:[%s166 + $0x70] sm:$0xff]
      %v189 = vld [vmem:[%s166 + $0x78] sm:$0xff]
      %v190 = vld [vmem:[%s1] sm:$0x1]
      %v192 = vlaneseq
      %v193 = vshrl.u32 %v192, 7
      %v194 = vsub.s32 0, %v193
      %v195 = vrot.slane %v190, %v194
      %v197 = vmul.f32 %v174, %v195
      %v198 = vmul.f32 %v175, %v195
      %v199 = vmul.f32 %v176, %v195
      %v200 = vmul.f32 %v177, %v195
      %v201 = vmul.f32 %v178, %v195
      %v202 = vmul.f32 %v179, %v195
      %v203 = vmul.f32 %v180, %v195
      %v204 = vmul.f32 %v181, %v195
      %v205 = vmul.f32 %v182, %v195
      %v206 = vmul.f32 %v183, %v195
      %v207 = vmul.f32 %v184, %v195
      %v208 = vmul.f32 %v185, %v195
      %v209 = vmul.f32 %v186, %v195
      %v210 = vmul.f32 %v187, %v195
      %v211 = vmul.f32 %v188, %v195
      %v212 = vmul.f32 %v189, %v195
      %v213 = vld [vmem:[%s2] sm:$0x1]
      %v215 = vlaneseq
      %v216 = vshrl.u32 %v215, 7
      %v217 = vsub.s32 0, %v216
      %v218 = vrot.slane %v213, %v217
      %v220 = vadd.f32 %v197, %v218
      %v221 = vadd.f32 %v198, %v218
      %v222 = vadd.f32 %v199, %v218
      %v223 = vadd.f32 %v200, %v218
      %v224 = vadd.f32 %v201, %v218
      %v225 = vadd.f32 %v202, %v218
      %v226 = vadd.f32 %v203, %v218
      %v227 = vadd.f32 %v204, %v218
      %v228 = vadd.f32 %v205, %v218
      %v229 = vadd.f32 %v206, %v218
      %v230 = vadd.f32 %v207, %v218
      %v231 = vadd.f32 %v208, %v218
      %v232 = vadd.f32 %v209, %v218
      %v233 = vadd.f32 %v210, %v218
      %v234 = vadd.f32 %v211, %v218
      %v235 = vadd.f32 %v212, %v218
      %236 = vst [vmem:[%s172] sm:$0xff] %v220
      %237 = vst [vmem:[%s172 + $0x8] sm:$0xff] %v221
      %238 = vst [vmem:[%s172 + $0x10] sm:$0xff] %v222
      %239 = vst [vmem:[%s172 + $0x18] sm:$0xff] %v223
      %240 = vst [vmem:[%s172 + $0x20] sm:$0xff] %v224
      %241 = vst [vmem:[%s172 + $0x28] sm:$0xff] %v225
      %242 = vst [vmem:[%s172 + $0x30] sm:$0xff] %v226
      %243 = vst [vmem:[%s172 + $0x38] sm:$0xff] %v227
      %244 = vst [vmem:[%s172 + $0x40] sm:$0xff] %v228
      %245 = vst [vmem:[%s172 + $0x48] sm:$0xff] %v229
      %246 = vst [vmem:[%s172 + $0x50] sm:$0xff] %v230
      %247 = vst [vmem:[%s172 + $0x58] sm:$0xff] %v231
      %248 = vst [vmem:[%s172 + $0x60] sm:$0xff] %v232
      %249 = vst [vmem:[%s172 + $0x68] sm:$0xff] %v233
      %250 = vst [vmem:[%s172 + $0x70] sm:$0xff] %v234
      %251 = vst [vmem:[%s172 + $0x78] sm:$0xff] %v235
      %s252 = smul.u32 16, %s14
      %p253 = scmp.lt.s32.totalorder %s252, 63
      %s254 = scalar_select %p253, %s252, 63
      %s255 = smul.addr %s254, 8
      %s256 = scalar_lea.vmem %s3, %s255
      // Predicated region
      $region33: #{conv_bn_forward.3} parent=31 // pred_check
        %p257 = pneg %p100
      $region34: #{conv_bn_forward.3} parent=31 // pred_check_branch
        %259 = sbr.rel (%p257) target = $region36
      $region35: #{conv_bn_forward.3} parent=31 // pred_region
        %s260 = smul.u32 16, %s14
      $region36: #{conv_bn_forward.3} parent=31 // pred_fallthru
        _
    $region32: #{conv_bn_forward.3} parent=5 // pred_fallthru
      _
    %p261 = scmp.le.s32.totalorder 2, %s9
    // Predicated region
    $region37: #{conv_bn_forward.3} parent=5 // pred_check
      %p262 = pneg %p261
    $region38: #{conv_bn_forward.3} parent=5 // pred_check_branch
      %264 = sbr.rel (%p262) target = $region40
    $region39: #{conv_bn_forward.3} parent=5 // pred_region
      %s265 = ssub.s32 %s9, 2
      // Predicated region
      $region41: #{conv_bn_forward.3} parent=39 // pred_check
        %p266 = pneg %p106
      $region42: #{conv_bn_forward.3} parent=39 // pred_check_branch
        %268 = sbr.rel (%p266) target = $region44
      $region43: #{conv_bn_forward.3} parent=39 // pred_region
        %s269 = smul.u32 16, %s15
        %p270 = scmp.lt.s32.totalorder %s269, 63
        %s271 = scalar_select %p270, %s269, 63
        %s272 = smul.addr %s271, 8
        %s273 = scalar_lea.vmem %s3, %s272
      $region44: #{conv_bn_forward.3} parent=39 // pred_fallthru
        _
    $region40: #{conv_bn_forward.3} parent=5 // pred_fallthru
      _
  $region6: #{conv_bn_forward.3} parent=0 // loop_footer
    %s13 = sadd.s32 1, %s9
  $region7: #{conv_bn_forward.3} parent=0 // loop_footer_branch
    %8 = sbr.rel target = $region3
  $region8: #{conv_bn_forward.3} parent=0 // loop_exit
    _

// kernel: conv_bn_forward.2
$region0: #{conv_bn_forward.2}
  #allocation0 [shape = 'u32[]', space=smem, size = 0x4, offset = 0x4, fixed_abs, tag = 'smem constant byte address 0x4 - core index']
  #allocation1 [shape = 'u32[144,128]{1,0:T(1,128)}', space=vmem, size = 0x12000, scoped, tag = 'internal scratch']
  #allocation2 [shape = 'f32[128,128]{1,0:T(8,128)}', space=vmem, size = 0x10000, scoped, tag = 'scratch operand']
  %s0 = inlined_call_operand.vmem [shape: f32[512,128], index: 0, kind: input, shape index: {}]
  %s1 = inlined_call_operand.vmem [shape: f32[128,128], index: 1, kind: input, shape index: {}]
  %s2 = inlined_call_operand.vmem [shape: f32[512,128], index: 2, kind: output, shape index: {0}]
  %s3 = inlined_call_operand.vmem [shape: f32[4,2,128], index: 3, kind: output, shape index: {1}]
  %4 = xla_tuple %s2, %s3
  %s5 = sld [smem:[#allocation0]]
  $region57: #{conv_bn_forward.2} parent=0
    _
  %s7 = ssub.s32 1, %s5
  %s8 = scalar_select 0, %s7, %s5
  loop: start=0, step=1, limit=6
  $region2: #{conv_bn_forward.2} parent=0 // loop_pre_header
    _
  $region3: #{conv_bn_forward.2} parent=0 // loop_header
    %s10 = sphi 0, %s14
    %p11 = scmp.ge.s32.totalorder %s10, 6
    %s17 = sphi 0, %s29
    %s18 = sphi 0, %s25
    %s19 = sphi 0, %s17
    %s20 = sphi 0, %s18
    %s21 = sphi 0, %s19
    %s22 = sphi 0, %s20
    %s34 = sphi 0, %s36
    %s37 = sphi 0, %s34
    %s38 = sphi 0, %s37
    %s54 = sphi 0, %s38
    %s60 = sphi 0, %s62
    %s63 = sphi 0, %s60
    %s64 = sphi 0, %s63
    %s80 = sphi 0, %s64
    %s86 = sphi 0, %s88
    %s89 = sphi 0, %s86
    %s90 = sphi 0, %s89
    %s106 = sphi 0, %s90
    %s112 = sphi 0, %s114
    %s115 = sphi 0, %s112
    %s116 = sphi 0, %s115
    %s132 = sphi 0, %s116
  $region4: #{conv_bn_forward.2} parent=0 // loop_header_branch
    %13 = sbr.rel (%p11) target = $region8
  $region5: #{conv_bn_forward.2} parent=0 // loop_body
    %s15 = ssub.s32 %s10, 1
    %s16 = ssub.s32 %s10, 2
    %s23 = sadd.s32 1, %s18
    %p24 = scmp.ge.s32.totalorder %s23, 1
    %s25 = scalar_select %p24, 0, %s23
    %s26 = sadd.s32 1, %s17
    %s27 = scalar_select %p24, %s26, %s17
    %p28 = scmp.ge.s32.totalorder %s27, 4
    %s29 = scalar_select %p28, 0, %s27
    %s30 = ssub.s32 %s17, %s29
    %s31 = ssub.s32 %s18, %s25
    %s32 = sor.u32 %s30, %s31
    %p33 = scmp.eq.s32.totalorder %s32, 0
    %s35 = sadd.s32 %s34, 1
    %s36 = scalar_select %p33, %s34, %s35
    %p39 = pneg %p33
    %p40 = scmp.eq.s32.totalorder %s10, 3
    %p41 = por %p39, %p40
    %p42 = scmp.ne.s32.totalorder %s34, %s37
    %p43 = scmp.eq.s32.totalorder %s10, 0
    %p44 = por %p42, %p43
    %p45 = scmp.ne.s32.totalorder %s34, %s37
    %p46 = scmp.eq.s32.totalorder %s15, 3
    %p47 = por %p45, %p46
    %p48 = scmp.ne.s32.totalorder %s37, %s38
    %p49 = scmp.eq.s32.totalorder %s15, 0
    %p50 = por %p48, %p49
    %p51 = scmp.ne.s32.totalorder %s37, %s38
    %p52 = scmp.eq.s32.totalorder %s16, 3
    %p53 = por %p51, %p52
    %p55 = scmp.ne.s32.totalorder %s38, %s54
    %p56 = scmp.eq.s32.totalorder %s16, 0
    %p57 = por %p55, %p56
    %s58 = ssub.s32 %s18, %s25
    %p59 = scmp.eq.s32.totalorder %s58, 0
    %s61 = sadd.s32 %s60, 1
    %s62 = scalar_select %p59, %s60, %s61
    %p65 = pneg %p59
    %p66 = scmp.eq.s32.totalorder %s10, 3
    %p67 = por %p65, %p66
    %p68 = scmp.ne.s32.totalorder %s60, %s63
    %p69 = scmp.eq.s32.totalorder %s10, 0
    %p70 = por %p68, %p69
    %p71 = scmp.ne.s32.totalorder %s60, %s63
    %p72 = scmp.eq.s32.totalorder %s15, 3
    %p73 = por %p71, %p72
    %p74 = scmp.ne.s32.totalorder %s63, %s64
    %p75 = scmp.eq.s32.totalorder %s15, 0
    %p76 = por %p74, %p75
    %p77 = scmp.ne.s32.totalorder %s63, %s64
    %p78 = scmp.eq.s32.totalorder %s16, 3
    %p79 = por %p77, %p78
    %p81 = scmp.ne.s32.totalorder %s64, %s80
    %p82 = scmp.eq.s32.totalorder %s16, 0
    %p83 = por %p81, %p82
    %s84 = ssub.s32 %s17, %s29
    %p85 = scmp.eq.s32.totalorder %s84, 0
    %s87 = sadd.s32 %s86, 1
    %s88 = scalar_select %p85, %s86, %s87
    %p91 = pneg %p85
    %p92 = scmp.eq.s32.totalorder %s10, 3
    %p93 = por %p91, %p92
    %p94 = scmp.ne.s32.totalorder %s86, %s89
    %p95 = scmp.eq.s32.totalorder %s10, 0
    %p96 = por %p94, %p95
    %p97 = scmp.ne.s32.totalorder %s86, %s89
    %p98 = scmp.eq.s32.totalorder %s15, 3
    %p99 = por %p97, %p98
    %p100 = scmp.ne.s32.totalorder %s89, %s90
    %p101 = scmp.eq.s32.totalorder %s15, 0
    %p102 = por %p100, %p101
    %p103 = scmp.ne.s32.totalorder %s89, %s90
    %p104 = scmp.eq.s32.totalorder %s16, 3
    %p105 = por %p103, %p104
    %p107 = scmp.ne.s32.totalorder %s90, %s106
    %p108 = scmp.eq.s32.totalorder %s16, 0
    %p109 = por %p107, %p108
    %s110 = ssub.s32 %s17, %s29
    %p111 = scmp.eq.s32.totalorder %s110, 0
    %s113 = sadd.s32 %s112, 1
    %s114 = scalar_select %p111, %s112, %s113
    %p117 = pneg %p111
    %p118 = scmp.eq.s32.totalorder %s10, 3
    %p119 = por %p117, %p118
    %p120 = scmp.ne.s32.totalorder %s112, %s115
    %p121 = scmp.eq.s32.totalorder %s10, 0
    %p122 = por %p120, %p121
    %p123 = scmp.ne.s32.totalorder %s112, %s115
    %p124 = scmp.eq.s32.totalorder %s15, 3
    %p125 = por %p123, %p124
    %p126 = scmp.ne.s32.totalorder %s115, %s116
    %p127 = scmp.eq.s32.totalorder %s15, 0
    %p128 = por %p126, %p127
    %p129 = scmp.ne.s32.totalorder %s115, %s116
    %p130 = scmp.eq.s32.totalorder %s16, 3
    %p131 = por %p129, %p130
    %p133 = scmp.ne.s32.totalorder %s116, %s132
    %p134 = scmp.eq.s32.totalorder %s16, 0
    %p135 = por %p133, %p134
    %p136 = scmp.le.s32.totalorder 1, %s10
    %p137 = scmp.lt.s32.totalorder %s10, 5
    %p138 = pnand %p136, %p137
    %p139 = pneg %p138
    // Predicated region
    $region9: #{conv_bn_forward.2} parent=5 // pred_check
      _
    $region10: #{conv_bn_forward.2} parent=5 // pred_check_branch
      %141 = sbr.rel (%p138) target = $region12
    $region11: #{conv_bn_forward.2} parent=5 // pred_region
      %s142 = ssub.s32 %s10, 1
      // Predicated region
      $region13: #{conv_bn_forward.2} parent=11 // pred_check
        %p143 = pneg %p76
      $region14: #{conv_bn_forward.2} parent=11 // pred_check_branch
        %145 = sbr.rel (%p143) target = $region16
      $region15: #{conv_bn_forward.2} parent=11 // pred_region
        %s146 = smul.u32 16, %s20
        %p147 = scmp.lt.s32.totalorder %s146, 15
        %s148 = scalar_select %p147, %s146, 15
        %s149 = smul.addr %s148, 8
        %s150 = scalar_lea.vmem %s1, %s149
        %s151 = smul.u32 16, %s20
      $region16: #{conv_bn_forward.2} parent=11 // pred_fallthru
        _
    $region12: #{conv_bn_forward.2} parent=5 // pred_fallthru
      _
    %p152 = scmp.lt.s32.totalorder %s10, 4
    // Predicated region
    $region17: #{conv_bn_forward.2} parent=5 // pred_check
      %p153 = pneg %p152
    $region18: #{conv_bn_forward.2} parent=5 // pred_check_branch
      %155 = sbr.rel (%p153) target = $region20
    $region19: #{conv_bn_forward.2} parent=5 // pred_region
      // Predicated region
      $region21: #{conv_bn_forward.2} parent=19 // pred_check
        %p156 = pneg %p44
      $region22: #{conv_bn_forward.2} parent=19 // pred_check_branch
        %158 = sbr.rel (%p156) target = $region24
      $region23: #{conv_bn_forward.2} parent=19 // pred_region
        %s159 = smul.u32 16, %s17
        %p160 = scmp.lt.s32.totalorder %s159, 63
        %s161 = scalar_select %p160, %s159, 63
        %p162 = scmp.lt.s32.totalorder %s18, 0
        %s163 = scalar_select %p162, %s18, 0
        %s164 = sadd.s32 %s163, %s161
        %s165 = smul.addr %s164, 8
        %s166 = scalar_lea.vmem %s0, %s165
        %s167 = smul.u32 16, %s17
      $region24: #{conv_bn_forward.2} parent=19 // pred_fallthru
        _
    $region20: #{conv_bn_forward.2} parent=5 // pred_fallthru
      _
    %p168 = scmp.le.s32.totalorder 1, %s10
    %p169 = scmp.lt.s32.totalorder %s10, 5
    %p170 = pnand %p168, %p169
    %p171 = pneg %p170
    // Predicated region
    $region25: #{conv_bn_forward.2} parent=5 // pred_check
      _
    $region26: #{conv_bn_forward.2} parent=5 // pred_check_branch
      %173 = sbr.rel (%p170) target = $region28
    $region27: #{conv_bn_forward.2} parent=5 // pred_region
      %s174 = ssub.s32 %s10, 1
      %s175 = smul.u32 16, %s19
      %p176 = scmp.lt.s32.totalorder %s175, 63
      %s177 = scalar_select %p176, %s175, 63
      %p178 = scmp.lt.s32.totalorder %s20, 0
      %s179 = scalar_select %p178, %s20, 0
      %s180 = sadd.s32 %s179, %s177
      %s181 = smul.addr %s180, 8
      %s182 = scalar_lea.vmem %s0, %s181
      %p183 = pneg %p50
      %p184 = pneg %p47
      %s185 = smul.u32 16, %s20
      %p186 = scmp.lt.s32.totalorder %s185, 15
      %s187 = scalar_select %p186, %s185, 15
      %s188 = smul.addr %s187, 8
      %s189 = scalar_lea.vmem %s1, %s188
      %p190 = pneg %p76
      %p191 = pneg %p73
      %p192 = pneg %p102
      %p193 = pneg %p99
      %s194 = smul.u32 16, %s19
      %p195 = scmp.lt.s32.totalorder %s194, 63
      %s196 = scalar_select %p195, %s194, 63
      %s197 = smul.addr %s196, 8
      %s198 = scalar_lea.vmem %s2, %s197
      %p199 = pneg %p128
      %p200 = pneg %p125
      %p201 = scmp.lt.s32.totalorder %s19, 3
      %s202 = scalar_select %p201, %s19, 3
      %s203 = smul.addr %s202, 2
      %s204 = scalar_lea.vmem %s3, %s203
      %s205 = smul.u32 16, %s19
      %p206 = scmp.lt.s32.totalorder %s205, 63
      %s207 = scalar_select %p206, %s205, 63
      %p208 = scmp.lt.s32.totalorder %s20, 0
      %s209 = scalar_select %p208, %s20, 0
      %s210 = sadd.s32 %s209, %s207
      %s211 = smul.addr %s210, 8
      %s212 = scalar_lea.vmem %s0, %s211
      %s213 = smul.u32 16, %s19
      %s214 = smul.u32 16, %s20
      %p215 = scmp.lt.s32.totalorder %s214, 15
      %s216 = scalar_select %p215, %s214, 15
      %s217 = smul.addr %s216, 8
      %s218 = scalar_lea.vmem %s1, %s217
      %s219 = smul.u32 16, %s20
      %s220 = smul.u32 16, %s19
      %p221 = scmp.lt.s32.totalorder %s220, 63
      %s222 = scalar_select %p221, %s220, 63
      %s223 = smul.addr %s222, 8
      %s224 = scalar_lea.vmem %s2, %s223
      %s225 = smul.u32 16, %s19
      %p226 = scmp.lt.s32.totalorder %s19, 3
      %s227 = scalar_select %p226, %s19, 3
      %s228 = smul.addr %s227, 2
      %s229 = scalar_lea.vmem %s3, %s228
      %p230 = scmp.eq.s32.totalorder %s20, 0
      // Predicated region
      $region29: #{conv_bn_forward.2} parent=27 // pred_check
        %p231 = pneg %p230
      $region30: #{conv_bn_forward.2} parent=27 // pred_check_branch
        %233 = sbr.rel (%p231) target = $region32
      $region31: #{conv_bn_forward.2} parent=27 // pred_region
        %234 = vst [vmem:[#allocation2] sm:$0xff] 0.0
        %235 = vst [vmem:[#allocation2 + $0x8] sm:$0xff] 0.0
        %236 = vst [vmem:[#allocation2 + $0x10] sm:$0xff] 0.0
        %237 = vst [vmem:[#allocation2 + $0x18] sm:$0xff] 0.0
        %238 = vst [vmem:[#allocation2 + $0x20] sm:$0xff] 0.0
        %239 = vst [vmem:[#allocation2 + $0x28] sm:$0xff] 0.0
        %240 = vst [vmem:[#allocation2 + $0x30] sm:$0xff] 0.0
        %241 = vst [vmem:[#allocation2 + $0x38] sm:$0xff] 0.0
        %242 = vst [vmem:[#allocation2 + $0x40] sm:$0xff] 0.0
        %243 = vst [vmem:[#allocation2 + $0x48] sm:$0xff] 0.0
        %244 = vst [vmem:[#allocation2 + $0x50] sm:$0xff] 0.0
        %245 = vst [vmem:[#allocation2 + $0x58] sm:$0xff] 0.0
        %246 = vst [vmem:[#allocation2 + $0x60] sm:$0xff] 0.0
        %247 = vst [vmem:[#allocation2 + $0x68] sm:$0xff] 0.0
        %248 = vst [vmem:[#allocation2 + $0x70] sm:$0xff] 0.0
        %249 = vst [vmem:[#allocation2 + $0x78] sm:$0xff] 0.0
      $region32: #{conv_bn_forward.2} parent=27 // pred_fallthru
        _
      %v250 = vld [vmem:[#allocation2] sm:$0xff]
      %v251 = vld [vmem:[#allocation2 + $0x8] sm:$0xff]
      %v252 = vld [vmem:[#allocation2 + $0x10] sm:$0xff]
      %v253 = vld [vmem:[#allocation2 + $0x18] sm:$0xff]
      %v254 = vld [vmem:[#allocation2 + $0x20] sm:$0xff]
      %v255 = vld [vmem:[#allocation2 + $0x28] sm:$0xff]
      %v256 = vld [vmem:[#allocation2 + $0x30] sm:$0xff]
      %v257 = vld [vmem:[#allocation2 + $0x38] sm:$0xff]
      %v258 = vld [vmem:[#allocation2 + $0x40] sm:$0xff]
      %v259 = vld [vmem:[#allocation2 + $0x48] sm:$0xff]
      %v260 = vld [vmem:[#allocation2 + $0x50] sm:$0xff]
      %v261 = vld [vmem:[#allocation2 + $0x58] sm:$0xff]
      %v262 = vld [vmem:[#allocation2 + $0x60] sm:$0xff]
      %v263 = vld [vmem:[#allocation2 + $0x68] sm:$0xff]
      %v264 = vld [vmem:[#allocation2 + $0x70] sm:$0xff]
      %v265 = vld [vmem:[#allocation2 + $0x78] sm:$0xff]
      %v266 = vld [vmem:[%s212] sm:$0xff]
      %v267 = vld [vmem:[%s212 + $0x8] sm:$0xff]
      %v268 = vld [vmem:[%s212 + $0x10] sm:$0xff]
      %v269 = vld [vmem:[%s212 + $0x18] sm:$0xff]
      %v270 = vld [vmem:[%s212 + $0x20] sm:$0xff]
      %v271 = vld [vmem:[%s212 + $0x28] sm:$0xff]
      %v272 = vld [vmem:[%s212 + $0x30] sm:$0xff]
      %v273 = vld [vmem:[%s212 + $0x38] sm:$0xff]
      %v274 = vld [vmem:[%s212 + $0x40] sm:$0xff]
      %v275 = vld [vmem:[%s212 + $0x48] sm:$0xff]
      %v276 = vld [vmem:[%s212 + $0x50] sm:$0xff]
      %v277 = vld [vmem:[%s212 + $0x58] sm:$0xff]
      %v278 = vld [vmem:[%s212 + $0x60] sm:$0xff]
      %v279 = vld [vmem:[%s212 + $0x68] sm:$0xff]
      %v280 = vld [vmem:[%s212 + $0x70] sm:$0xff]
      %v281 = vld [vmem:[%s212 + $0x78] sm:$0xff]
      %v282 = vld [vmem:[%s218] sm:$0xff]
      %v283 = vld [vmem:[%s218 + $0x8] sm:$0xff]
      %v284 = vld [vmem:[%s218 + $0x10] sm:$0xff]
      %v285 = vld [vmem:[%s218 + $0x18] sm:$0xff]
      %v286 = vld [vmem:[%s218 + $0x20] sm:$0xff]
      %v287 = vld [vmem:[%s218 + $0x28] sm:$0xff]
      %v288 = vld [vmem:[%s218 + $0x30] sm:$0xff]
      %v289 = vld [vmem:[%s218 + $0x38] sm:$0xff]
      %v290 = vld [vmem:[%s218 + $0x40] sm:$0xff]
      %v291 = vld [vmem:[%s218 + $0x48] sm:$0xff]
      %v292 = vld [vmem:[%s218 + $0x50] sm:$0xff]
      %v293 = vld [vmem:[%s218 + $0x58] sm:$0xff]
      %v294 = vld [vmem:[%s218 + $0x60] sm:$0xff]
      %v295 = vld [vmem:[%s218 + $0x68] sm:$0xff]
      %v296 = vld [vmem:[%s218 + $0x70] sm:$0xff]
      %v297 = vld [vmem:[%s218 + $0x78] sm:$0xff]
      %298 = vmatprep.subr.mxu0 0.0
      %299 = vmatpush1.msra.mxu0 %v297
      %300 = vmatprep.subr.mxu0 0.0
      %301 = vmatpush1.msra.mxu0 %v296
      %302 = vmatprep.subr.mxu0 0.0
      %303 = vmatpush1.msra.mxu0 %v295
      %304 = vmatprep.subr.mxu0 0.0
      %305 = vmatpush1.msra.mxu0 %v294
      %306 = vmatprep.subr.mxu0 0.0
      %307 = vmatpush1.msra.mxu0 %v293
      %308 = vmatprep.subr.mxu0 0.0
      %309 = vmatpush1.msra.mxu0 %v292
      %310 = vmatprep.subr.mxu0 0.0
      %311 = vmatpush1.msra.mxu0 %v291
      %312 = vmatprep.subr.mxu0 0.0
      %313 = vmatpush1.msra.mxu0 %v290
      %314 = vmatprep.subr.mxu0 0.0
      %315 = vmatpush1.msra.mxu0 %v289
      %316 = vmatprep.subr.mxu0 0.0
      %317 = vmatpush1.msra.mxu0 %v288
      %318 = vmatprep.subr.mxu0 0.0
      %319 = vmatpush1.msra.mxu0 %v287
      %320 = vmatprep.subr.mxu0 0.0
      %321 = vmatpush1.msra.mxu0 %v286
      %322 = vmatprep.subr.mxu0 0.0
      %323 = vmatpush1.msra.mxu0 %v285
      %324 = vmatprep.subr.mxu0 0.0
      %325 = vmatpush1.msra.mxu0 %v284
      %326 = vmatprep.subr.mxu0 0.0
      %327 = vmatpush1.msra.mxu0 %v283
      %328 = vmatprep.subr.mxu0 0.0
      %329 = vmatpush1.msra.mxu0 %v282
      %330 = vmatprep.subr.mxu0 0.0
      %331 = vmatpush2.msra.mxu0 0.0
      %332 = vmatprep.subr.mxu0 0.0
      %333 = vmatpush2.msra.mxu0 0.0
      %334 = vmatprep.subr.mxu0 0.0
      %335 = vmatpush2.msra.mxu0 0.0
      %336 = vmatprep.subr.mxu0 0.0
      %337 = vmatpush2.msra.mxu0 0.0
      %338 = vmatprep.subr.mxu0 0.0
      %339 = vmatpush2.msra.mxu0 0.0
      %340 = vmatprep.subr.mxu0 0.0
      %341 = vmatpush2.msra.mxu0 0.0
      %342 = vmatprep.subr.mxu0 0.0
      %343 = vmatpush2.msra.mxu0 0.0
      %344 = vmatprep.subr.mxu0 0.0
      %345 = vmatpush2.msra.mxu0 0.0
      %346 = vmatprep.subr.mxu0 0.0
      %347 = vmatpush2.msra.mxu0 0.0
      %348 = vmatprep.subr.mxu0 0.0
      %349 = vmatpush2.msra.mxu0 0.0
      %350 = vmatprep.subr.mxu0 0.0
      %351 = vmatpush2.msra.mxu0 0.0
      %352 = vmatprep.subr.mxu0 0.0
      %353 = vmatpush2.msra.mxu0 0.0
      %354 = vmatprep.subr.mxu0 0.0
      %355 = vmatpush2.msra.mxu0 0.0
      %356 = vmatprep.subr.mxu0 0.0
      %357 = vmatpush2.msra.mxu0 0.0
      %358 = vmatprep.subr.mxu0 0.0
      %359 = vmatpush2.msra.mxu0 0.0
      %360 = vmatprep.subr.mxu0 0.0
      %361 = vmatpush2.msra.mxu0 0.0
      %362 = vmatprep.mubr.f32.mxu0 0.0
      %363 = vmatmul.mubr.f32.gmra.mxu0 %v266
      %v364 = vpop.f32.mrf.mxu0
      %v365 = vadd.f32 0.0, %v364
      %v366 = vpop.f32.mrf.mxu0
      %367 = vmatprep.mubr.f32.mxu0 0.0
      %368 = vmatmul.mubr.f32.gmra.mxu0 %v267
      %v369 = vpop.f32.mrf.mxu0
      %v370 = vadd.f32 0.0, %v369
      %v371 = vpop.f32.mrf.mxu0
      %372 = vmatprep.mubr.f32.mxu0 0.0
      %373 = vmatmul.mubr.f32.gmra.mxu0 %v268
      %v374 = vpop.f32.mrf.mxu0
      %v375 = vadd.f32 0.0, %v374
      %v376 = vpop.f32.mrf.mxu0
      %377 = vmatprep.mubr.f32.mxu0 0.0
      %378 = vmatmul.mubr.f32.gmra.mxu0 %v269
      %v379 = vpop.f32.mrf.mxu0
      %v380 = vadd.f32 0.0, %v379
      %v381 = vpop.f32.mrf.mxu0
      %382 = vmatprep.mubr.f32.mxu0 0.0
      %383 = vmatmul.mubr.f32.gmra.mxu0 %v270
      %v384 = vpop.f32.mrf.mxu0
      %v385 = vadd.f32 0.0, %v384
      %v386 = vpop.f32.mrf.mxu0
      %387 = vmatprep.mubr.f32.mxu0 0.0
      %388 = vmatmul.mubr.f32.gmra.mxu0 %v271
      %v389 = vpop.f32.mrf.mxu0
      %v390 = vadd.f32 0.0, %v389
      %v391 = vpop.f32.mrf.mxu0
      %392 = vmatprep.mubr.f32.mxu0 0.0
      %393 = vmatmul.mubr.f32.gmra.mxu0 %v272
      %v394 = vpop.f32.mrf.mxu0
      %v395 = vadd.f32 0.0, %v394
      %v396 = vpop.f32.mrf.mxu0
      %397 = vmatprep.mubr.f32.mxu0 0.0
      %398 = vmatmul.mubr.f32.gmra.mxu0 %v273
      %v399 = vpop.f32.mrf.mxu0
      %v400 = vadd.f32 0.0, %v399
      %v401 = vpop.f32.mrf.mxu0
      %402 = vmatprep.mubr.f32.mxu0 0.0
      %403 = vmatmul.mubr.f32.gmra.mxu0 %v274
      %v404 = vpop.f32.mrf.mxu0
      %v405 = vadd.f32 0.0, %v404
      %v406 = vpop.f32.mrf.mxu0
      %407 = vmatprep.mubr.f32.mxu0 0.0
      %408 = vmatmul.mubr.f32.gmra.mxu0 %v275
      %v409 = vpop.f32.mrf.mxu0
      %v410 = vadd.f32 0.0, %v409
      %v411 = vpop.f32.mrf.mxu0
      %412 = vmatprep.mubr.f32.mxu0 0.0
      %413 = vmatmul.mubr.f32.gmra.mxu0 %v276
      %v414 = vpop.f32.mrf.mxu0
      %v415 = vadd.f32 0.0, %v414
      %v416 = vpop.f32.mrf.mxu0
      %417 = vmatprep.mubr.f32.mxu0 0.0
      %418 = vmatmul.mubr.f32.gmra.mxu0 %v277
      %v419 = vpop.f32.mrf.mxu0
      %v420 = vadd.f32 0.0, %v419
      %v421 = vpop.f32.mrf.mxu0
      %422 = vmatprep.mubr.f32.mxu0 0.0
      %423 = vmatmul.mubr.f32.gmra.mxu0 %v278
      %v424 = vpop.f32.mrf.mxu0
      %v425 = vadd.f32 0.0, %v424
      %v426 = vpop.f32.mrf.mxu0
      %427 = vmatprep.mubr.f32.mxu0 0.0
      %428 = vmatmul.mubr.f32.gmra.mxu0 %v279
      %v429 = vpop.f32.mrf.mxu0
      %v430 = vadd.f32 0.0, %v429
      %v431 = vpop.f32.mrf.mxu0
      %432 = vmatprep.mubr.f32.mxu0 0.0
      %433 = vmatmul.mubr.f32.gmra.mxu0 %v280
      %v434 = vpop.f32.mrf.mxu0
      %v435 = vadd.f32 0.0, %v434
      %v436 = vpop.f32.mrf.mxu0
      %437 = vmatprep.mubr.f32.mxu0 0.0
      %438 = vmatmul.mubr.f32.gmra.mxu0 %v281
      %v439 = vpop.f32.mrf.mxu0
      %v440 = vadd.f32 0.0, %v439
      %v441 = vpop.f32.mrf.mxu0
      %442 = vdwg.mxu0
      %v443 = vadd.f32 %v250, %v365
      %v444 = vadd.f32 %v251, %v370
      %v445 = vadd.f32 %v252, %v375
      %v446 = vadd.f32 %v253, %v380
      %v447 = vadd.f32 %v254, %v385
      %v448 = vadd.f32 %v255, %v390
      %v449 = vadd.f32 %v256, %v395
      %v450 = vadd.f32 %v257, %v400
      %v451 = vadd.f32 %v258, %v405
      %v452 = vadd.f32 %v259, %v410
      %v453 = vadd.f32 %v260, %v415
      %v454 = vadd.f32 %v261, %v420
      %v455 = vadd.f32 %v262, %v425
      %v456 = vadd.f32 %v263, %v430
      %v457 = vadd.f32 %v264, %v435
      %v458 = vadd.f32 %v265, %v440
      %459 = vst [vmem:[#allocation2] sm:$0xff] %v443
      %460 = vst [vmem:[#allocation2 + $0x8] sm:$0xff] %v444
      %461 = vst [vmem:[#allocation2 + $0x10] sm:$0xff] %v445
      %462 = vst [vmem:[#allocation2 + $0x18] sm:$0xff] %v446
      %463 = vst [vmem:[#allocation2 + $0x20] sm:$0xff] %v447
      %464 = vst [vmem:[#allocation2 + $0x28] sm:$0xff] %v448
      %465 = vst [vmem:[#allocation2 + $0x30] sm:$0xff] %v449
      %466 = vst [vmem:[#allocation2 + $0x38] sm:$0xff] %v450
      %467 = vst [vmem:[#allocation2 + $0x40] sm:$0xff] %v451
      %468 = vst [vmem:[#allocation2 + $0x48] sm:$0xff] %v452
      %469 = vst [vmem:[#allocation2 + $0x50] sm:$0xff] %v453
      %470 = vst [vmem:[#allocation2 + $0x58] sm:$0xff] %v454
      %471 = vst [vmem:[#allocation2 + $0x60] sm:$0xff] %v455
      %472 = vst [vmem:[#allocation2 + $0x68] sm:$0xff] %v456
      %473 = vst [vmem:[#allocation2 + $0x70] sm:$0xff] %v457
      %474 = vst [vmem:[#allocation2 + $0x78] sm:$0xff] %v458
      // Predicated region
      $region33: #{conv_bn_forward.2} parent=27 // pred_check
        %p475 = pneg %p230
      $region34: #{conv_bn_forward.2} parent=27 // pred_check_branch
        %477 = sbr.rel (%p475) target = $region36
      $region35: #{conv_bn_forward.2} parent=27 // pred_region
        %v478 = vld [vmem:[#allocation2] sm:$0xff]
        %v479 = vld [vmem:[#allocation2 + $0x8] sm:$0xff]
        %v480 = vld [vmem:[#allocation2 + $0x10] sm:$0xff]
        %v481 = vld [vmem:[#allocation2 + $0x18] sm:$0xff]
        %v482 = vld [vmem:[#allocation2 + $0x20] sm:$0xff]
        %v483 = vld [vmem:[#allocation2 + $0x28] sm:$0xff]
        %v484 = vld [vmem:[#allocation2 + $0x30] sm:$0xff]
        %v485 = vld [vmem:[#allocation2 + $0x38] sm:$0xff]
        %v486 = vld [vmem:[#allocation2 + $0x40] sm:$0xff]
        %v487 = vld [vmem:[#allocation2 + $0x48] sm:$0xff]
        %v488 = vld [vmem:[#allocation2 + $0x50] sm:$0xff]
        %v489 = vld [vmem:[#allocation2 + $0x58] sm:$0xff]
        %v490 = vld [vmem:[#allocation2 + $0x60] sm:$0xff]
        %v491 = vld [vmem:[#allocation2 + $0x68] sm:$0xff]
        %v492 = vld [vmem:[#allocation2 + $0x70] sm:$0xff]
        %v493 = vld [vmem:[#allocation2 + $0x78] sm:$0xff]
        %494 = vst [vmem:[%s224] sm:$0xff] %v478
        %495 = vst [vmem:[%s224 + $0x8] sm:$0xff] %v479
        %496 = vst [vmem:[%s224 + $0x10] sm:$0xff] %v480
        %497 = vst [vmem:[%s224 + $0x18] sm:$0xff] %v481
        %498 = vst [vmem:[%s224 + $0x20] sm:$0xff] %v482
        %499 = vst [vmem:[%s224 + $0x28] sm:$0xff] %v483
        %500 = vst [vmem:[%s224 + $0x30] sm:$0xff] %v484
        %501 = vst [vmem:[%s224 + $0x38] sm:$0xff] %v485
        %502 = vst [vmem:[%s224 + $0x40] sm:$0xff] %v486
        %503 = vst [vmem:[%s224 + $0x48] sm:$0xff] %v487
        %504 = vst [vmem:[%s224 + $0x50] sm:$0xff] %v488
        %505 = vst [vmem:[%s224 + $0x58] sm:$0xff] %v489
        %506 = vst [vmem:[%s224 + $0x60] sm:$0xff] %v490
        %507 = vst [vmem:[%s224 + $0x68] sm:$0xff] %v491
        %508 = vst [vmem:[%s224 + $0x70] sm:$0xff] %v492
        %509 = vst [vmem:[%s224 + $0x78] sm:$0xff] %v493
        %v510 = vadd.f32 %v478, %v479
        %v511 = vadd.f32 %v510, %v480
        %v512 = vadd.f32 %v511, %v481
        %v513 = vadd.f32 %v512, %v482
        %v514 = vadd.f32 %v513, %v483
        %v515 = vadd.f32 %v514, %v484
        %v516 = vadd.f32 %v515, %v485
        %v517 = vadd.f32 %v516, %v486
        %v518 = vadd.f32 %v517, %v487
        %v519 = vadd.f32 %v518, %v488
        %v520 = vadd.f32 %v519, %v489
        %v521 = vadd.f32 %v520, %v490
        %v522 = vadd.f32 %v521, %v491
        %v523 = vadd.f32 %v522, %v492
        %v524 = vadd.f32 %v523, %v493
        %v525 = vrot.slane %v524, 4
        %v526 = vadd.f32 %v524, %v525
        %v527 = vrot.slane %v526, 2
        %v528 = vadd.f32 %v526, %v527
        %v529 = vrot.slane %v528, 1
        %v530 = vadd.f32 %v528, %v529
        %v531 = vmul.f32 %v478, %v478
        %v532 = vmul.f32 %v479, %v479
        %v533 = vmul.f32 %v480, %v480
        %v534 = vmul.f32 %v481, %v481
        %v535 = vmul.f32 %v482, %v482
        %v536 = vmul.f32 %v483, %v483
        %v537 = vmul.f32 %v484, %v484
        %v538 = vmul.f32 %v485, %v485
        %v539 = vmul.f32 %v486, %v486
        %v540 = vmul.f32 %v487, %v487
        %v541 = vmul.f32 %v488, %v488
        %v542 = vmul.f32 %v489, %v489
        %v543 = vmul.f32 %v490, %v490
        %v544 = vmul.f32 %v491, %v491
        %v545 = vmul.f32 %v492, %v492
        %v546 = vmul.f32 %v493, %v493
        %v547 = vadd.f32 %v531, %v532
        %v548 = vadd.f32 %v547, %v533
        %v549 = vadd.f32 %v548, %v534
        %v550 = vadd.f32 %v549, %v535
        %v551 = vadd.f32 %v550, %v536
        %v552 = vadd.f32 %v551, %v537
        %v553 = vadd.f32 %v552, %v538
        %v554 = vadd.f32 %v553, %v539
        %v555 = vadd.f32 %v554, %v540
        %v556 = vadd.f32 %v555, %v541
        %v557 = vadd.f32 %v556, %v542
        %v558 = vadd.f32 %v557, %v543
        %v559 = vadd.f32 %v558, %v544
        %v560 = vadd.f32 %v559, %v545
        %v561 = vadd.f32 %v560, %v546
        %v562 = vrot.slane %v561, 4
        %v563 = vadd.f32 %v561, %v562
        %v564 = vrot.slane %v563, 2
        %v565 = vadd.f32 %v563, %v564
        %v566 = vrot.slane %v565, 1
        %v567 = vadd.f32 %v565, %v566
        %vm568 = vcmask 1040384
        %v569 = vsel %vm568, %v530, %v567
        %570 = vst [vmem:[%s229] sm:$0x3] %v569
      $region36: #{conv_bn_forward.2} parent=27 // pred_fallthru
        _
      %s571 = smul.u32 16, %s19
      %p572 = scmp.lt.s32.totalorder %s571, 63
      %s573 = scalar_select %p572, %s571, 63
      %s574 = smul.addr %s573, 8
      %s575 = scalar_lea.vmem %s2, %s574
      %p576 = scmp.lt.s32.totalorder %s19, 3
      %s577 = scalar_select %p576, %s19, 3
      %s578 = smul.addr %s577, 2
      %s579 = scalar_lea.vmem %s3, %s578
      // Predicated region
      $region37: #{conv_bn_forward.2} parent=27 // pred_check
        %p580 = pneg %p99
      $region38: #{conv_bn_forward.2} parent=27 // pred_check_branch
        %582 = sbr.rel (%p580) target = $region40
      $region39: #{conv_bn_forward.2} parent=27 // pred_region
        %s583 = smul.u32 16, %s19
      $region40: #{conv_bn_forward.2} parent=27 // pred_fallthru
        _
      // Predicated region
      $region41: #{conv_bn_forward.2} parent=27 // pred_check
        %p584 = pneg %p125
      $region42: #{conv_bn_forward.2} parent=27 // pred_check_branch
        %586 = sbr.rel (%p584) target = $region44
      $region43: #{conv_bn_forward.2} parent=27 // pred_region
        _
      $region44: #{conv_bn_forward.2} parent=27 // pred_fallthru
        _
    $region28: #{conv_bn_forward.2} parent=5 // pred_fallthru
      _
    %p587 = scmp.le.s32.totalorder 2, %s10
    // Predicated region
    $region45: #{conv_bn_forward.2} parent=5 // pred_check
      %p588 = pneg %p587
    $region46: #{conv_bn_forward.2} parent=5 // pred_check_branch
      %590 = sbr.rel (%p588) target = $region48
    $region47: #{conv_bn_forward.2} parent=5 // pred_region
      %s591 = ssub.s32 %s10, 2
      // Predicated region
      $region49: #{conv_bn_forward.2} parent=47 // pred_check
        %p592 = pneg %p105
      $region50: #{conv_bn_forward.2} parent=47 // pred_check_branch
        %594 = sbr.rel (%p592) target = $region52
      $region51: #{conv_bn_forward.2} parent=47 // pred_region
        %s595 = smul.u32 16, %s21
        %p596 = scmp.lt.s32.totalorder %s595, 63
        %s597 = scalar_select %p596, %s595, 63
        %s598 = smul.addr %s597, 8
        %s599 = scalar_lea.vmem %s2, %s598
      $region52: #{conv_bn_forward.2} parent=47 // pred_fallthru
        _
      // Predicated region
      $region53: #{conv_bn_forward.2} parent=47 // pred_check
        %p600 = pneg %p131
      $region54: #{conv_bn_forward.2} parent=47 // pred_check_branch
        %602 = sbr.rel (%p600) target = $region56
      $region55: #{conv_bn_forward.2} parent=47 // pred_region
        %p603 = scmp.lt.s32.totalorder %s21, 3
        %s604 = scalar_select %p603, %s21, 3
        %s605 = smul.addr %s604, 2
        %s606 = scalar_lea.vmem %s3, %s605
      $region56: #{conv_bn_forward.2} parent=47 // pred_fallthru
        _
    $region48: #{conv_bn_forward.2} parent=5 // pred_fallthru
      _
  $region6: #{conv_bn_forward.2} parent=0 // loop_footer
    %s14 = sadd.s32 1, %s10
  $region7: #{conv_bn_forward.2} parent=0 // loop_footer_branch
    %9 = sbr.rel target = $region3
  $region8: #{conv_bn_forward.2} parent=0 // loop_exit
    _

</llo_original>
